<compile_context>
chip_gen: v5e
topology: v5e:2x2
jax: 0.10.0
libtpu: 0.0.40
codegen_flags: <defaults>
</compile_context>

<pallas_src>
import jax
import jax.numpy as jnp
from jax.experimental import pallas as pl
from jax.experimental.pallas import tpu as pltpu

INPUT_SIZE = 14
HIDDEN = 16
NUM_CLASSES = 3


def _round_up(n, m):
    return (n + m - 1) // m * m


def navigator_kernel(x_ref, w1_ref, b1_ref, w2_ref, b2_ref, w3_ref, b3_ref, o_ref):
    # x is kept f32 in HBM; cast (if needed) happens here, on the VPU, for free
    # relative to the DMA time.  All matmuls accumulate in f32 on the MXU.
    x = x_ref[...].astype(w1_ref.dtype)
    # fc1 + ReLU
    h1 = jnp.dot(x, w1_ref[...], preferred_element_type=jnp.float32) + b1_ref[...]
    h1 = jnp.maximum(h1, 0.0)
    # fc2 + ReLU
    h2 = jnp.dot(h1.astype(w2_ref.dtype), w2_ref[...],
                 preferred_element_type=jnp.float32) + b2_ref[...]
    h2 = jnp.maximum(h2, 0.0)
    # fc3 (logits, no activation)
    out = jnp.dot(h2.astype(w3_ref.dtype), w3_ref[...],
                  preferred_element_type=jnp.float32) + b3_ref[...]
    o_ref[...] = out.astype(o_ref.dtype)


def _pick_tile(B, block_b):
    """Batch-tile rows per grid step.

    Multiple of 8 (f32 sublane tile), capped at 2048 rows (VMEM-safe with
    double buffering on v5e/v6e/v7x), and split in half when the whole batch
    would otherwise be a single grid step so v7x's two TensorCores both get
    work and load/compute/store overlap is preserved.
    """
    sub = 8
    tb = min(_round_up(max(block_b, sub), sub), 2048, _round_up(B, sub))
    if _round_up(B, sub) <= tb and B > sub:
        tb = max(sub, _round_up(pl.cdiv(B, 2), sub))
    return tb


def navigator_forward(x, params, *, block_b=1024, compute_dtype=jnp.float32):
    """x: (B, INPUT_SIZE) float32.  Returns (B, NUM_CLASSES) float32."""
    B = x.shape[0]
    TB = _pick_tile(B, block_b)
    grid = pl.cdiv(B, TB)

    # Weights/biases are tiny (<2 KiB total); cast in the wrapper is negligible.
    w1 = params["w1"].astype(compute_dtype)
    w2 = params["w2"].astype(compute_dtype)
    w3 = params["w3"].astype(compute_dtype)
    b1 = params["b1"].astype(jnp.float32)
    b2 = params["b2"].astype(jnp.float32)
    b3 = params["b3"].astype(jnp.float32)

    # Full-array, constant-index blocks: weights/biases stay resident in VMEM
    # across all grid steps (no re-DMA).
    resident = lambda a: pl.BlockSpec(a.shape, lambda i, _nd=a.ndim: (0,) * _nd)

    flops = 2 * B * (INPUT_SIZE * HIDDEN + HIDDEN * HIDDEN + HIDDEN * NUM_CLASSES)
    bytes_accessed = (
        B * INPUT_SIZE * x.dtype.itemsize
        + B * NUM_CLASSES * 4
        + sum(int(a.size) * a.dtype.itemsize for a in (w1, b1, w2, b2, w3, b3))
    )

    out = pl.pallas_call(
        navigator_kernel,
        out_shape=jax.ShapeDtypeStruct((B, NUM_CLASSES), jnp.float32),
        grid=(grid,),
        in_specs=[
            pl.BlockSpec((TB, INPUT_SIZE), lambda i: (i, 0)),
            resident(w1), resident(b1),
            resident(w2), resident(b2),
            resident(w3), resident(b3),
        ],
        out_specs=pl.BlockSpec((TB, NUM_CLASSES), lambda i: (i, 0)),
        compiler_params=pltpu.CompilerParams(
            dimension_semantics=("parallel",)),
        cost_estimate=pl.CostEstimate(
            flops=flops, transcendentals=0, bytes_accessed=bytes_accessed),
    )(x, w1, b1, w2, b2, w3, b3)
    return out


def init_params(key):
    """Deterministic init mimicking nn.Linear's uniform(-1/sqrt(fan_in), +)."""
    ks = jax.random.split(key, 6)

    def linear(kw, kb, fan_in, fan_out):
        bound = 1.0 / jnp.sqrt(fan_in)
        # stored as (in, out) so the kernel does x @ W  (== PyTorch x @ W_t.T)
        w = jax.random.uniform(kw, (fan_in, fan_out), jnp.float32, -bound, bound)
        b = jax.random.uniform(kb, (1, fan_out), jnp.float32, -bound, bound)
        return w, b

    w1, b1 = linear(ks[0], ks[1], INPUT_SIZE, HIDDEN)
    w2, b2 = linear(ks[2], ks[3], HIDDEN, HIDDEN)
    w3, b3 = linear(ks[4], ks[5], HIDDEN, NUM_CLASSES)
    return {"w1": w1, "b1": b1, "w2": w2, "b2": b2, "w3": w3, "b3": b3}


def reference_forward(x, p):
    h1 = jnp.maximum(x @ p["w1"] + p["b1"], 0.0)
    h2 = jnp.maximum(h1 @ p["w2"] + p["b2"], 0.0)
    return h2 @ p["w3"] + p["b3"]


if __name__ == "__main__":
    key = jax.random.PRNGKey(0)
    k_params, k_x1, k_x2 = jax.random.split(key, 3)
    params = init_params(k_params)

    # 1) Small batch, f32 compute: tight tolerance vs pure-JAX reference.
    B = 8
    x = jax.random.normal(k_x1, (B, INPUT_SIZE), jnp.float32)
    out = jax.block_until_ready(navigator_forward(x, params))
    ref = reference_forward(x, params)
    assert out.shape == (B, NUM_CLASSES)
    assert jnp.allclose(out, ref, atol=1e-5, rtol=1e-5), "f32 mismatch vs reference"

    # 2) Ragged batch exercising the grid (TB=128, grid=3, partial last block).
    B2 = 300
    x2 = jax.random.normal(k_x2, (B2, INPUT_SIZE), jnp.float32)
    out2 = jax.block_until_ready(navigator_forward(x2, params, block_b=128))
    ref2 = reference_forward(x2, params)
    assert out2.shape == (B2, NUM_CLASSES)
    assert jnp.allclose(out2, ref2, atol=1e-5, rtol=1e-5), "gridded f32 mismatch"

    # 2b) Default tiling on the ragged batch: whole batch fits one tile, so it
    #     is split into >= 2 parallel grid steps (v7x two-TensorCore path).
    out2b = jax.block_until_ready(navigator_forward(x2, params))
    assert jnp.allclose(out2b, ref2, atol=1e-5, rtol=1e-5), "split-tile f32 mismatch"

    # 3) Optional bf16 operand path (x stays f32 in HBM, cast in-kernel),
    #    f32 accumulation; loose tolerance.
    out_bf16 = jax.block_until_ready(
        navigator_forward(x, params, compute_dtype=jnp.bfloat16))
    assert jnp.allclose(out_bf16, ref, atol=5e-2, rtol=5e-2), "bf16 mismatch"

    print("KERNEL_OK")
</pallas_src>

<mosaic_0001>
module attributes {stable_mosaic.version = 11 : i64} {
  func.func @navigator_kernel(%arg0: i32, %arg1: memref<8x14xf32, #tpu.memory_space<vmem>>, %arg2: memref<14x16xf32, #tpu.memory_space<vmem>>, %arg3: memref<1x16xf32, #tpu.memory_space<vmem>>, %arg4: memref<16x16xf32, #tpu.memory_space<vmem>>, %arg5: memref<1x16xf32, #tpu.memory_space<vmem>>, %arg6: memref<16x3xf32, #tpu.memory_space<vmem>>, %arg7: memref<1x3xf32, #tpu.memory_space<vmem>>, %arg8: memref<8x3xf32, #tpu.memory_space<vmem>>) attributes {dimension_semantics = [#tpu.dimension_semantics<parallel>], iteration_bounds = array<i64: 1>, scalar_prefetch = 0 : i64, scratch_operands = 0 : i64, tpu.core_type = #tpu.core_type<tc>, window_params = [{transform_indices = @transform_0, window_bounds = array<i64: 8, 14>}, {pipeline_mode = #tpu.pipeline_mode<synchronous>, transform_indices = @transform_1, window_bounds = array<i64: 14, 16>}, {pipeline_mode = #tpu.pipeline_mode<synchronous>, transform_indices = @transform_2, window_bounds = array<i64: 1, 16>}, {pipeline_mode = #tpu.pipeline_mode<synchronous>, transform_indices = @transform_3, window_bounds = array<i64: 16, 16>}, {pipeline_mode = #tpu.pipeline_mode<synchronous>, transform_indices = @transform_4, window_bounds = array<i64: 1, 16>}, {pipeline_mode = #tpu.pipeline_mode<synchronous>, transform_indices = @transform_5, window_bounds = array<i64: 16, 3>}, {pipeline_mode = #tpu.pipeline_mode<synchronous>, transform_indices = @transform_6, window_bounds = array<i64: 1, 3>}, {transform_indices = @transform_7, window_bounds = array<i64: 8, 3>}]} {
    %c0 = arith.constant 0 : index
    %c0_0 = arith.constant 0 : index
    %0 = vector.load %arg1[%c0, %c0_0] : memref<8x14xf32, #tpu.memory_space<vmem>>, vector<8x14xf32>
    %c0_1 = arith.constant 0 : index
    %c0_2 = arith.constant 0 : index
    %1 = vector.load %arg2[%c0_1, %c0_2] : memref<14x16xf32, #tpu.memory_space<vmem>>, vector<14x16xf32>
    %cst = arith.constant dense<0.000000e+00> : vector<8x16xf32>
    %2 = tpu.matmul %0, %1, %cst {dimension_numbers = #tpu.dot_dimension_numbers<[1], [0], [0], [1], [0, 0, 1, 1], [], []>} : vector<8x14xf32>, vector<14x16xf32>, vector<8x16xf32> -> vector<8x16xf32>
    %c0_3 = arith.constant 0 : index
    %c0_4 = arith.constant 0 : index
    %3 = vector.load %arg3[%c0_3, %c0_4] : memref<1x16xf32, #tpu.memory_space<vmem>>, vector<1x16xf32>
    %4 = vector.broadcast %3 : vector<1x16xf32> to vector<8x16xf32>
    %5 = arith.addf %2, %4 : vector<8x16xf32>
    %cst_5 = arith.constant 0.000000e+00 : f32
    %6 = vector.broadcast %cst_5 : f32 to vector<8x16xf32>
    %7 = arith.maximumf %5, %6 : vector<8x16xf32>
    %c0_6 = arith.constant 0 : index
    %c0_7 = arith.constant 0 : index
    %8 = vector.load %arg4[%c0_6, %c0_7] : memref<16x16xf32, #tpu.memory_space<vmem>>, vector<16x16xf32>
    %cst_8 = arith.constant dense<0.000000e+00> : vector<8x16xf32>
    %9 = tpu.matmul %7, %8, %cst_8 {dimension_numbers = #tpu.dot_dimension_numbers<[1], [0], [0], [1], [0, 0, 1, 1], [], []>} : vector<8x16xf32>, vector<16x16xf32>, vector<8x16xf32> -> vector<8x16xf32>
    %c0_9 = arith.constant 0 : index
    %c0_10 = arith.constant 0 : index
    %10 = vector.load %arg5[%c0_9, %c0_10] : memref<1x16xf32, #tpu.memory_space<vmem>>, vector<1x16xf32>
    %11 = vector.broadcast %10 : vector<1x16xf32> to vector<8x16xf32>
    %12 = arith.addf %9, %11 : vector<8x16xf32>
    %cst_11 = arith.constant 0.000000e+00 : f32
    %13 = vector.broadcast %cst_11 : f32 to vector<8x16xf32>
    %14 = arith.maximumf %12, %13 : vector<8x16xf32>
    %c0_12 = arith.constant 0 : index
    %c0_13 = arith.constant 0 : index
    %15 = vector.load %arg6[%c0_12, %c0_13] : memref<16x3xf32, #tpu.memory_space<vmem>>, vector<16x3xf32>
    %cst_14 = arith.constant dense<0.000000e+00> : vector<8x3xf32>
    %16 = tpu.matmul %14, %15, %cst_14 {dimension_numbers = #tpu.dot_dimension_numbers<[1], [0], [0], [1], [0, 0, 1, 1], [], []>} : vector<8x16xf32>, vector<16x3xf32>, vector<8x3xf32> -> vector<8x3xf32>
    %c0_15 = arith.constant 0 : index
    %c0_16 = arith.constant 0 : index
    %17 = vector.load %arg7[%c0_15, %c0_16] : memref<1x3xf32, #tpu.memory_space<vmem>>, vector<1x3xf32>
    %18 = vector.broadcast %17 : vector<1x3xf32> to vector<8x3xf32>
    %19 = arith.addf %16, %18 : vector<8x3xf32>
    %c0_17 = arith.constant 0 : index
    %c0_18 = arith.constant 0 : index
    %20 = vector.load %arg8[%c0_17, %c0_18] : memref<8x3xf32, #tpu.memory_space<vmem>>, vector<8x3xf32>
    tpu.vector_store %arg8[%c0_17, %c0_18], %19 {strides = array<i32>} : memref<8x3xf32, #tpu.memory_space<vmem>>, vector<8x3xf32>,
    return
  }
  func.func @transform_0(%arg0: i32) -> (i32, i32) {
    %c0_i32 = arith.constant 0 : i32
    %c0_i32_0 = arith.constant 0 : i32
    return %arg0, %c0_i32 : i32, i32
  }
  func.func @transform_1(%arg0: i32) -> (i32, i32) {
    %c0_i32 = arith.constant 0 : i32
    %c0_i32_0 = arith.constant 0 : i32
    %c0_i32_1 = arith.constant 0 : i32
    return %c0_i32, %c0_i32_0 : i32, i32
  }
  func.func @transform_2(%arg0: i32) -> (i32, i32) {
    %c0_i32 = arith.constant 0 : i32
    %c0_i32_0 = arith.constant 0 : i32
    %c0_i32_1 = arith.constant 0 : i32
    return %c0_i32, %c0_i32_0 : i32, i32
  }
  func.func @transform_3(%arg0: i32) -> (i32, i32) {
    %c0_i32 = arith.constant 0 : i32
    %c0_i32_0 = arith.constant 0 : i32
    %c0_i32_1 = arith.constant 0 : i32
    return %c0_i32, %c0_i32_0 : i32, i32
  }
  func.func @transform_4(%arg0: i32) -> (i32, i32) {
    %c0_i32 = arith.constant 0 : i32
    %c0_i32_0 = arith.constant 0 : i32
    %c0_i32_1 = arith.constant 0 : i32
    return %c0_i32, %c0_i32_0 : i32, i32
  }
  func.func @transform_5(%arg0: i32) -> (i32, i32) {
    %c0_i32 = arith.constant 0 : i32
    %c0_i32_0 = arith.constant 0 : i32
    %c0_i32_1 = arith.constant 0 : i32
    return %c0_i32, %c0_i32_0 : i32, i32
  }
  func.func @transform_6(%arg0: i32) -> (i32, i32) {
    %c0_i32 = arith.constant 0 : i32
    %c0_i32_0 = arith.constant 0 : i32
    %c0_i32_1 = arith.constant 0 : i32
    return %c0_i32, %c0_i32_0 : i32, i32
  }
  func.func @transform_7(%arg0: i32) -> (i32, i32) {
    %c0_i32 = arith.constant 0 : i32
    %c0_i32_0 = arith.constant 0 : i32
    return %arg0, %c0_i32 : i32, i32
  }
}

</mosaic_0001>

<llo_original>
// kernel: tpu_custom_call.1
$region0: #{tpu_custom_call.1}
  #allocation0 [shape = 'u32[]', space=smem, size = 0x4, offset = 0x4, fixed_abs, tag = 'smem constant byte address 0x4 - core index']
  #allocation1 [shape = 'u32[72,128]{1,0:T(1,128)}', space=vmem, size = 0x9000, scoped, tag = 'internal scratch']
  %s0 = inlined_call_operand.hbm [shape: f32[8,14], index: 0, kind: input, shape index: {}]
  %s1 = inlined_call_operand.vmem [shape: f32[14,16], index: 1, kind: input, shape index: {}]
  %s2 = inlined_call_operand.vmem [shape: f32[1,16], index: 2, kind: input, shape index: {}]
  %s3 = inlined_call_operand.hbm [shape: f32[16,16], index: 3, kind: input, shape index: {}]
  %s4 = inlined_call_operand.vmem [shape: f32[1,16], index: 4, kind: input, shape index: {}]
  %s5 = inlined_call_operand.vmem [shape: f32[16,3], index: 5, kind: input, shape index: {}]
  %s6 = inlined_call_operand.vmem [shape: f32[1,3], index: 6, kind: input, shape index: {}]
  %s7 = inlined_call_operand.vmem [shape: f32[8,3], index: 7, kind: output, shape index: {}]
  %s8 = sld [smem:[#allocation0]]
  $region46: #{tpu_custom_call.1} parent=0
    _
  %s10 = ssub.s32 1, %s8
  %s11 = scalar_select 0, %s10, %s8
  $region1: #{tpu_custom_call.1} parent=0
    #allocation2 [shape = 'u8[4096]{0}', space=vmem, size = 0x1000, scoped, tag = 'input window, operand 0, single buffered']
    #allocation3 [shape = 's32[1]{0}', space=sflag, size = 0x4, scoped, tag = 'scoped memory for tpu_custom_call.1']
    #allocation4 [shape = 'u8[8192]{0}', space=vmem, size = 0x2000, scoped, tag = 'input window, operand 3, single buffered']
    #allocation5 [shape = 's32[1]{0}', space=sflag, size = 0x4, scoped, tag = 'scoped memory for tpu_custom_call.1']
    %12 = vsyncpa [#allocation3], 0
    %13 = vsyncpa [#allocation5], 0
    // Predicated region
    $region2: #{tpu_custom_call.1} parent=1 // pred_check
      _
    $region3: #{tpu_custom_call.1} parent=1 // pred_check_branch
      %15 = sbr.rel (0) target = $region5
    $region4: #{tpu_custom_call.1} parent=1 // pred_region
      %17 = vsyncadd [#allocation3], 0
      %s19 = sshll.u32 %s0, 4
      %s20 = int_to_ptr.hbm [resolvable:$true] %s19
      %s21 = sshll.u32 [#allocation2], 4
      %s22 = int_to_ptr.vmem [resolvable:$true] %s21
      %24 = dma.hbm_to_vmem [thread:$0]  %s20, 128, %s22, [#allocation3]
    $region5: #{tpu_custom_call.1} parent=1 // pred_fallthru
      _
    // Predicated region
    $region6: #{tpu_custom_call.1} parent=1 // pred_check
      _
    $region7: #{tpu_custom_call.1} parent=1 // pred_check_branch
      %26 = sbr.rel (0) target = $region9
    $region8: #{tpu_custom_call.1} parent=1 // pred_region
      _
    $region9: #{tpu_custom_call.1} parent=1 // pred_fallthru
      _
    // Predicated region
    $region10: #{tpu_custom_call.1} parent=1 // pred_check
      _
    $region11: #{tpu_custom_call.1} parent=1 // pred_check_branch
      %28 = sbr.rel (0) target = $region13
    $region12: #{tpu_custom_call.1} parent=1 // pred_region
      _
    $region13: #{tpu_custom_call.1} parent=1 // pred_fallthru
      _
    // Predicated region
    $region14: #{tpu_custom_call.1} parent=1 // pred_check
      _
    $region15: #{tpu_custom_call.1} parent=1 // pred_check_branch
      %30 = sbr.rel (0) target = $region17
    $region16: #{tpu_custom_call.1} parent=1 // pred_region
      %32 = vsyncadd [#allocation5], 0
      %s33 = sshll.u32 %s3, 4
      %s34 = int_to_ptr.hbm [resolvable:$true] %s33
      %s35 = sshll.u32 [#allocation4], 4
      %s36 = int_to_ptr.vmem [resolvable:$true] %s35
      %41 = dma.hbm_to_vmem [thread:$0]  %s34, 256, %s36, [#allocation5], 128, 128, 8
    $region17: #{tpu_custom_call.1} parent=1 // pred_fallthru
      _
    // Predicated region
    $region18: #{tpu_custom_call.1} parent=1 // pred_check
      _
    $region19: #{tpu_custom_call.1} parent=1 // pred_check_branch
      %43 = sbr.rel (0) target = $region21
    $region20: #{tpu_custom_call.1} parent=1 // pred_region
      _
    $region21: #{tpu_custom_call.1} parent=1 // pred_fallthru
      _
    // Predicated region
    $region22: #{tpu_custom_call.1} parent=1 // pred_check
      _
    $region23: #{tpu_custom_call.1} parent=1 // pred_check_branch
      %45 = sbr.rel (0) target = $region25
    $region24: #{tpu_custom_call.1} parent=1 // pred_region
      _
    $region25: #{tpu_custom_call.1} parent=1 // pred_fallthru
      _
    // Predicated region
    $region26: #{tpu_custom_call.1} parent=1 // pred_check
      _
    $region27: #{tpu_custom_call.1} parent=1 // pred_check_branch
      %47 = sbr.rel (0) target = $region29
    $region28: #{tpu_custom_call.1} parent=1 // pred_region
      _
    $region29: #{tpu_custom_call.1} parent=1 // pred_fallthru
      _
    // Predicated region
    $region30: #{tpu_custom_call.1} parent=1 // pred_check
      _
    $region31: #{tpu_custom_call.1} parent=1 // pred_check_branch
      %49 = sbr.rel (0) target = $region33
    $region32: #{tpu_custom_call.1} parent=1 // pred_region
      %51 = dma.done [#allocation3], 128
    $region33: #{tpu_custom_call.1} parent=1 // pred_fallthru
      _
    // Predicated region
    $region34: #{tpu_custom_call.1} parent=1 // pred_check
      _
    $region35: #{tpu_custom_call.1} parent=1 // pred_check_branch
      %53 = sbr.rel (0) target = $region37
    $region36: #{tpu_custom_call.1} parent=1 // pred_region
      %55 = dma.done [#allocation5], 256
    $region37: #{tpu_custom_call.1} parent=1 // pred_fallthru
      _
    %v56 = vld [vmem:[#allocation2] sm:$0xff]
    %v57 = vld [vmem:[%s1] sm:$0xff]
    %v58 = vld [vmem:[%s1 + $0x8] sm:$0x3f]
    %v59 = vld [vmem:[%s2] sm:$0x1]
    %v61 = vperm.slane %v59, 0
    %vm63 = vcmask 113664
    %v65 = vsel %vm63, %v56, 0
    %vm67 = vcmask 1045504
    %v69 = vsel %vm67, %v58, 0
    %71 = vmatpush.msra.mxu0 0.0
    %72 = vmatpush.msra.mxu0 0.0
    %73 = vmatpush.msra.mxu0 0.0
    %74 = vmatpush.msra.mxu0 0.0
    %75 = vmatpush.msra.mxu0 0.0
    %76 = vmatpush.msra.mxu0 0.0
    %77 = vmatpush.msra.mxu0 0.0
    %78 = vmatpush.msra.mxu0 0.0
    %79 = vmatpush.msra.mxu0 0.0
    %80 = vmatpush.msra.mxu0 0.0
    %81 = vmatpush.msra.mxu0 0.0
    %82 = vmatpush.msra.mxu0 0.0
    %83 = vmatpush.msra.mxu0 0.0
    %84 = vmatpush.msra.mxu0 0.0
    %85 = vmatpush.msra.mxu0 %v69
    %86 = vmatpush.msra.mxu0 %v57
    %87 = vmatmul.f32.gmra.mxu0 %v65
    %v88 = vpop.f32.mrf.mxu0
    %v89 = vadd.f32 %v61, %v88
    %90 = vdwg.mxu0
    %v91 = vmax.f32 %v89, 0.0
    %v92 = vld [vmem:[#allocation4] sm:$0xff]
    %v93 = vld [vmem:[#allocation4 + $0x8] sm:$0xff]
    %v94 = vld [vmem:[%s4] sm:$0x1]
    %v96 = vperm.slane %v94, 0
    %vm98 = vcmask 130048
    %v100 = vsel %vm98, %v91, 0
    %102 = vmatpush.msra.mxu0 0.0
    %103 = vmatpush.msra.mxu0 0.0
    %104 = vmatpush.msra.mxu0 0.0
    %105 = vmatpush.msra.mxu0 0.0
    %106 = vmatpush.msra.mxu0 0.0
    %107 = vmatpush.msra.mxu0 0.0
    %108 = vmatpush.msra.mxu0 0.0
    %109 = vmatpush.msra.mxu0 0.0
    %110 = vmatpush.msra.mxu0 0.0
    %111 = vmatpush.msra.mxu0 0.0
    %112 = vmatpush.msra.mxu0 0.0
    %113 = vmatpush.msra.mxu0 0.0
    %114 = vmatpush.msra.mxu0 0.0
    %115 = vmatpush.msra.mxu0 0.0
    %116 = vmatpush.msra.mxu0 %v93
    %117 = vmatpush.msra.mxu0 %v92
    %118 = vmatmul.f32.gmra.mxu0 %v100
    %v119 = vpop.f32.mrf.mxu0
    %v120 = vadd.f32 %v96, %v119
    %121 = vdwg.mxu0
    %v122 = vmax.f32 %v120, 0.0
    %v123 = vld [vmem:[%s5] sm:$0xff]
    %v124 = vld [vmem:[%s5 + $0x8] sm:$0xff]
    %v125 = vld [vmem:[%s6] sm:$0x1]
    %v127 = vperm.slane %v125, 0
    %v130 = vsel %vm98, %v122, 0
    %132 = vmatpush.msra.mxu0 0.0
    %133 = vmatpush.msra.mxu0 0.0
    %134 = vmatpush.msra.mxu0 0.0
    %135 = vmatpush.msra.mxu0 0.0
    %136 = vmatpush.msra.mxu0 0.0
    %137 = vmatpush.msra.mxu0 0.0
    %138 = vmatpush.msra.mxu0 0.0
    %139 = vmatpush.msra.mxu0 0.0
    %140 = vmatpush.msra.mxu0 0.0
    %141 = vmatpush.msra.mxu0 0.0
    %142 = vmatpush.msra.mxu0 0.0
    %143 = vmatpush.msra.mxu0 0.0
    %144 = vmatpush.msra.mxu0 0.0
    %145 = vmatpush.msra.mxu0 0.0
    %146 = vmatpush.msra.mxu0 %v124
    %147 = vmatpush.msra.mxu0 %v123
    %148 = vmatmul.f32.gmra.mxu0 %v130
    %v149 = vpop.f32.mrf.mxu0
    %v150 = vadd.f32 %v127, %v149
    %151 = vdwg.mxu0
    %vm152 = vcmask 23552
    %153 = vst.msk [vmem:[%s7] sm:$0xff] %vm152, %v150
    // Predicated region
    $region38: #{tpu_custom_call.1} parent=1 // pred_check
      _
    $region39: #{tpu_custom_call.1} parent=1 // pred_check_branch
      %155 = sbr.rel (0) target = $region41
    $region40: #{tpu_custom_call.1} parent=1 // pred_region
      _
    $region41: #{tpu_custom_call.1} parent=1 // pred_fallthru
      _
    // Predicated region
    $region42: #{tpu_custom_call.1} parent=1 // pred_check
      _
    $region43: #{tpu_custom_call.1} parent=1 // pred_check_branch
      %157 = sbr.rel (0) target = $region45
    $region44: #{tpu_custom_call.1} parent=1 // pred_region
      _
    $region45: #{tpu_custom_call.1} parent=1 // pred_fallthru
      _
    %158 = vsyncpa [#allocation3], 1
    %159 = vsyncpa [#allocation5], 1

</llo_original>
